<compile_context>
chip_gen: v5e
topology: v5e:2x2
jax: 0.10.0
libtpu: 0.0.40
codegen_flags: <defaults>
</compile_context>

<pallas_src>
import functools
import inspect

import jax
import jax.numpy as jnp
import numpy as np
from jax.experimental import pallas as pl
from jax.experimental.pallas import tpu as pltpu


# --------------------------------------------------------------------------- #
# Kernel                                                                       #
# --------------------------------------------------------------------------- #
def _clip_embed_kernel(patches_ref, w_ref, pos_ref, g_ref, b_ref, out_ref, *, eps: float):
    """One grid step == BB images.

    patches_ref: (BB, S, Kp)  bf16 flattened patches; row 0 of every image is zeros
                              (class-token slot), Kp = C*P*P padded to a 128-multiple.
    w_ref:       (Kp, D)      bf16 conv1 weight reshaped to a matmul RHS (zero-padded).
    pos_ref:     (S, D)       f32 positional embedding; row 0 = class_emb + pos[0].
    g_ref/b_ref: (1, D)       f32 ln_pre gamma / beta.
    out_ref:     (BB, S, D)   output (f32 by default).
    """
    BB = patches_ref.shape[0]
    S, D = pos_ref.shape

    # Grid-invariant operands: load / broadcast once per step (hoisted out of loop).
    w = w_ref[...]                                          # bf16 (Kp, D)
    pos = pos_ref[...]                                      # f32  (S, D)
    g = jnp.broadcast_to(g_ref[...], (S, D))                # f32  (S, D)
    b = jnp.broadcast_to(b_ref[...], (S, D))                # f32  (S, D)

    # Static (unrolled) loop over the images of this block. Each image is one
    # (S, Kp) @ (Kp, D) MXU matmul (bf16 in, f32 accumulate), fused +pos and
    # LayerNorm in f32, then one aligned full-tile store.
    for bi in range(BB):
        emb = jnp.dot(patches_ref[bi], w,
                      preferred_element_type=jnp.float32)   # (S, D) f32
        y = emb + pos
        mean = jnp.mean(y, axis=-1, keepdims=True)
        yc = y - mean
        var = jnp.mean(yc * yc, axis=-1, keepdims=True)
        y = yc * jax.lax.rsqrt(var + eps) * g + b
        out_ref[bi] = y.astype(out_ref.dtype)               # sublane-0 aligned store


# --------------------------------------------------------------------------- #
# Host-side helpers                                                            #
# --------------------------------------------------------------------------- #
def _vmem_capacity_bytes() -> int:
    """Per-core VMEM capacity; tuning-only (never hides kernel/lowering errors)."""
    if hasattr(pltpu, "get_tpu_info"):
        try:
            cap = getattr(pltpu.get_tpu_info(), "vmem_capacity_bytes", None)
            if cap:
                return int(cap)
        except Exception:  # hardware-query failure only affects tile-size tuning
            pass
    return 64 * 1024 * 1024  # conservative default (v7x per-core VMEM)


def _supports_buffered() -> bool:
    """Explicit capability check for BlockSpec(pipeline_mode=pl.Buffered(k))."""
    if not hasattr(pl, "Buffered"):
        return False
    try:
        return "pipeline_mode" in inspect.signature(pl.BlockSpec).parameters
    except (TypeError, ValueError):
        return False


def _block_bytes(bb, S, Kp, D, out_itemsize, single_buffer_consts):
    inp = bb * S * Kp * 2                      # bf16 patches block
    out = bb * S * D * out_itemsize            # output block
    consts = Kp * D * 2 + S * D * 4 + 2 * D * 4
    nbuf_const = 1 if single_buffer_consts else 2
    return 2 * (inp + out) + nbuf_const * consts   # inputs/outputs double-buffered


def _pick_block_batch(B, S, Kp, D, out_itemsize, vmem_cap, single_buffer_consts):
    """Largest BB that divides B, keeps >=2 grid steps and fits ~60% of VMEM;
    prefer an even number of grid steps (v7x megacore balance)."""
    max_bb = 16 if vmem_cap >= 96 * 1024 * 1024 else 8
    budget = int(0.6 * vmem_cap)
    feasible = [bb for bb in range(1, min(max_bb, B) + 1)
                if B % bb == 0 and B // bb >= 2
                and _block_bytes(bb, S, Kp, D, out_itemsize, single_buffer_consts) <= budget]
    if not feasible:
        return 1
    best = max(feasible)
    even = [bb for bb in feasible if (B // bb) % 2 == 0]
    if even and max(even) * 2 >= best:
        best = max(even)
    return best


def _vmem_limit_bytes(bb, S, Kp, D, out_itemsize, vmem_cap, single_buffer_consts):
    need = _block_bytes(bb, S, Kp, D, out_itemsize, single_buffer_consts)
    limit = max(need + (16 << 20), 32 << 20)          # headroom for Mosaic scratch
    hard_cap = min(int(0.75 * vmem_cap), 100 << 20)   # never request full VMEM (v7x!)
    return max(min(limit, hard_cap), need)


# --------------------------------------------------------------------------- #
# Public wrapper                                                               #
# --------------------------------------------------------------------------- #
def clip_input_embedding(x, conv_w, class_emb, pos_emb, ln_gamma, ln_beta,
                         *, patch_size: int, eps: float = 1e-5,
                         block_batch: int | None = None,
                         out_dtype=jnp.float32):
    """x: [B, C, H, W] (NCHW, like PyTorch). Returns [B, Np+1, D] in `out_dtype`."""
    B, C, H, W = x.shape
    P = patch_size
    D = conv_w.shape[0]
    gh, gw = H // P, W // P
    Np = gh * gw
    S = Np + 1                      # sequence length incl. class token
    K = C * P * P
    Kp = pl.cdiv(K, 128) * 128      # lane-align the contraction dim

    # --- host glue: im2col in bf16 (strided conv == patches @ W) -------------
    patches = x.astype(jnp.bfloat16).reshape(B, C, gh, P, gw, P)
    patches = patches.transpose(0, 2, 4, 1, 3, 5).reshape(B, Np, K)
    # Prepend one zero row per image (class-token slot) and pad K -> Kp in one op.
    patches = jnp.pad(patches, ((0, 0), (1, 0), (0, Kp - K)))          # (B, S, Kp)

    # conv weight (D, C, P, P) -> (K, D) bf16, zero-padded to (Kp, D).
    w_mat = conv_w.reshape(D, K).T.astype(jnp.bfloat16)
    if Kp > K:
        w_mat = jnp.pad(w_mat, ((0, Kp - K), (0, 0)))

    pos = pos_emb.astype(jnp.float32)                                   # (S, D)
    cls = class_emb.reshape(D).astype(jnp.float32)
    pos_full = jnp.concatenate([(cls + pos[0])[None, :], pos[1:]], axis=0)  # (S, D)
    gamma2d = ln_gamma.reshape(1, D).astype(jnp.float32)
    beta2d = ln_beta.reshape(1, D).astype(jnp.float32)

    out_itemsize = jnp.dtype(out_dtype).itemsize
    vmem_cap = _vmem_capacity_bytes()
    single_buffer_consts = _supports_buffered()

    BB = (block_batch if block_batch is not None
          else _pick_block_batch(B, S, Kp, D, out_itemsize, vmem_cap, single_buffer_consts))
    assert B % BB == 0, "block_batch must divide the batch size"

    const_kw = {"pipeline_mode": pl.Buffered(1)} if single_buffer_consts else {}
    vmem_limit = _vmem_limit_bytes(BB, S, Kp, D, out_itemsize, vmem_cap, single_buffer_consts)

    kernel = functools.partial(_clip_embed_kernel, eps=eps)
    call = pl.pallas_call(
        kernel,
        out_shape=jax.ShapeDtypeStruct((B, S, D), out_dtype),
        grid_spec=pltpu.PrefetchScalarGridSpec(
            num_scalar_prefetch=0,
            grid=(B // BB,),
            in_specs=[
                pl.BlockSpec((BB, S, Kp), lambda i: (i, 0, 0)),
                pl.BlockSpec((Kp, D), lambda i: (0, 0), **const_kw),
                pl.BlockSpec((S, D), lambda i: (0, 0), **const_kw),
                pl.BlockSpec((1, D), lambda i: (0, 0), **const_kw),
                pl.BlockSpec((1, D), lambda i: (0, 0), **const_kw),
            ],
            out_specs=pl.BlockSpec((BB, S, D), lambda i: (i, 0, 0)),
        ),
        compiler_params=pltpu.CompilerParams(
            dimension_semantics=("parallel",),
            vmem_limit_bytes=int(vmem_limit),
        ),
    )
    return call(patches, w_mat, pos_full, gamma2d, beta2d)


# --------------------------------------------------------------------------- #
# Pure-JAX reference (mirrors the PyTorch forward exactly, f32)                #
# --------------------------------------------------------------------------- #
def _reference(x, conv_w, class_emb, pos_emb, ln_gamma, ln_beta,
               *, patch_size: int, eps: float = 1e-5):
    y = jax.lax.conv_general_dilated(
        x.astype(jnp.float32), conv_w.astype(jnp.float32),
        window_strides=(patch_size, patch_size), padding="VALID",
        dimension_numbers=("NCHW", "OIHW", "NCHW"))          # (B, D, gh, gw)
    B, D = y.shape[0], y.shape[1]
    y = y.reshape(B, D, -1).transpose(0, 2, 1)               # (B, Np, D)
    cls = jnp.broadcast_to(class_emb.astype(jnp.float32), (B, 1, D))
    y = jnp.concatenate([cls, y], axis=1) + pos_emb.astype(jnp.float32)
    mean = y.mean(-1, keepdims=True)
    var = ((y - mean) ** 2).mean(-1, keepdims=True)
    return (y - mean) * jax.lax.rsqrt(var + eps) * ln_gamma + ln_beta


if __name__ == "__main__":
    # Small CLIP-consistent shapes: B=4, C=3, 16x16 image, patch 8 -> 4 patches,
    # hidden D=32, sequence length Np+1 = 5.  (Real-shape perf validation should
    # use e.g. Np=256, K=588->Kp=640, D=1024.)
    B, C, H, W = 4, 3, 16, 16
    P = 8
    D = 32
    Np = (H // P) * (W // P)

    key = jax.random.PRNGKey(0)
    kx, kw, kc, kp, kg, kb = jax.random.split(key, 6)

    x = jax.random.normal(kx, (B, C, H, W), dtype=jnp.float32)
    conv_w = jax.random.normal(kw, (D, C, P, P), dtype=jnp.float32) * 0.02
    class_emb = jax.random.normal(kc, (D,), dtype=jnp.float32) * (D ** -0.5)
    pos_emb = jax.random.normal(kp, (Np + 1, D), dtype=jnp.float32) * (D ** -0.5)
    ln_gamma = 1.0 + 0.1 * jax.random.normal(kg, (D,), dtype=jnp.float32)
    ln_beta = 0.1 * jax.random.normal(kb, (D,), dtype=jnp.float32)

    # jit the whole wrapper so the host-side im2col/cast/pad fuses into one XLA pass
    # feeding the pallas_call.
    embed = jax.jit(functools.partial(clip_input_embedding, patch_size=P))
    out = embed(x, conv_w, class_emb, pos_emb, ln_gamma, ln_beta)
    out = jax.block_until_ready(out)

    ref = _reference(x, conv_w, class_emb, pos_emb, ln_gamma, ln_beta, patch_size=P)
    # bf16 matmul operands -> looser tolerance than a pure-f32 conv.
    np.testing.assert_allclose(np.asarray(out), np.asarray(ref), rtol=2e-2, atol=2e-2)
    print("KERNEL_OK")
</pallas_src>

<mosaic_0001>
module attributes {stable_mosaic.version = 11 : i64} {
  func.func @_clip_embed_kernel(%arg0: i32, %arg1: memref<2x5x256xbf16, #tpu.memory_space<vmem>>, %arg2: memref<256x32xbf16, #tpu.memory_space<vmem>>, %arg3: memref<5x32xf32, #tpu.memory_space<vmem>>, %arg4: memref<1x32xf32, #tpu.memory_space<vmem>>, %arg5: memref<1x32xf32, #tpu.memory_space<vmem>>, %arg6: memref<2x5x32xf32, #tpu.memory_space<vmem>>) attributes {dimension_semantics = [#tpu.dimension_semantics<parallel>], iteration_bounds = array<i64: 2>, scalar_prefetch = 0 : i64, scratch_operands = 0 : i64, tpu.core_type = #tpu.core_type<tc>, window_params = [{transform_indices = @transform_0, window_bounds = array<i64: 2, 5, 256>}, {pipeline_mode = #tpu.pipeline_mode<synchronous>, transform_indices = @transform_1, window_bounds = array<i64: 256, 32>}, {pipeline_mode = #tpu.pipeline_mode<synchronous>, transform_indices = @transform_2, window_bounds = array<i64: 5, 32>}, {pipeline_mode = #tpu.pipeline_mode<synchronous>, transform_indices = @transform_3, window_bounds = array<i64: 1, 32>}, {pipeline_mode = #tpu.pipeline_mode<synchronous>, transform_indices = @transform_4, window_bounds = array<i64: 1, 32>}, {transform_indices = @transform_5, window_bounds = array<i64: 2, 5, 32>}]} {
    %c0 = arith.constant 0 : index
    %c0_0 = arith.constant 0 : index
    %0 = vector.load %arg2[%c0, %c0_0] : memref<256x32xbf16, #tpu.memory_space<vmem>>, vector<256x32xbf16>
    %c0_1 = arith.constant 0 : index
    %c0_2 = arith.constant 0 : index
    %1 = vector.load %arg3[%c0_1, %c0_2] : memref<5x32xf32, #tpu.memory_space<vmem>>, vector<5x32xf32>
    %c0_3 = arith.constant 0 : index
    %c0_4 = arith.constant 0 : index
    %2 = vector.load %arg4[%c0_3, %c0_4] : memref<1x32xf32, #tpu.memory_space<vmem>>, vector<1x32xf32>
    %3 = vector.shape_cast %2 : vector<1x32xf32> to vector<1x32xf32>
    %4 = vector.broadcast %3 : vector<1x32xf32> to vector<5x32xf32>
    %c0_5 = arith.constant 0 : index
    %c0_6 = arith.constant 0 : index
    %5 = vector.load %arg5[%c0_5, %c0_6] : memref<1x32xf32, #tpu.memory_space<vmem>>, vector<1x32xf32>
    %6 = vector.shape_cast %5 : vector<1x32xf32> to vector<1x32xf32>
    %7 = vector.broadcast %6 : vector<1x32xf32> to vector<5x32xf32>
    %c0_7 = arith.constant 0 : index
    %c0_8 = arith.constant 0 : index
    %c0_9 = arith.constant 0 : index
    %8 = vector.load %arg1[%c0_7, %c0_8, %c0_9] : memref<2x5x256xbf16, #tpu.memory_space<vmem>>, vector<1x5x256xbf16>
    %9 = vector.shape_cast %8 : vector<1x5x256xbf16> to vector<5x256xbf16>
    %cst = arith.constant dense<0.000000e+00> : vector<5x32xf32>
    %10 = tpu.matmul %9, %0, %cst {dimension_numbers = #tpu.dot_dimension_numbers<[1], [0], [0], [1], [0, 0, 1, 1], [], []>} : vector<5x256xbf16>, vector<256x32xbf16>, vector<5x32xf32> -> vector<5x32xf32>
    %11 = arith.addf %10, %1 : vector<5x32xf32>
    %cst_10 = arith.constant dense<0.000000e+00> : vector<5xf32>
    %12 = vector.multi_reduction <add>, %11, %cst_10 [1] : vector<5x32xf32> to vector<5xf32>
    %13 = vector.shape_cast %12 : vector<5xf32> to vector<5x1xf32>
    %cst_11 = arith.constant 3.200000e+01 : f32
    %14 = vector.broadcast %cst_11 : f32 to vector<5x1xf32>
    %15 = arith.divf %13, %14 : vector<5x1xf32>
    %16 = vector.broadcast %15 : vector<5x1xf32> to vector<5x32xf32>
    %17 = arith.subf %11, %16 : vector<5x32xf32>
    %18 = arith.mulf %17, %17 : vector<5x32xf32>
    %cst_12 = arith.constant dense<0.000000e+00> : vector<5xf32>
    %19 = vector.multi_reduction <add>, %18, %cst_12 [1] : vector<5x32xf32> to vector<5xf32>
    %20 = vector.shape_cast %19 : vector<5xf32> to vector<5x1xf32>
    %cst_13 = arith.constant 3.200000e+01 : f32
    %21 = vector.broadcast %cst_13 : f32 to vector<5x1xf32>
    %22 = arith.divf %20, %21 : vector<5x1xf32>
    %cst_14 = arith.constant 9.99999974E-6 : f32
    %23 = vector.broadcast %cst_14 : f32 to vector<5x1xf32>
    %24 = arith.addf %22, %23 : vector<5x1xf32>
    %25 = math.rsqrt %24 : vector<5x1xf32>
    %26 = vector.broadcast %25 : vector<5x1xf32> to vector<5x32xf32>
    %27 = arith.mulf %17, %26 : vector<5x32xf32>
    %28 = arith.mulf %27, %4 : vector<5x32xf32>
    %29 = arith.addf %28, %7 : vector<5x32xf32>
    %c0_15 = arith.constant 0 : index
    %c0_16 = arith.constant 0 : index
    %c0_17 = arith.constant 0 : index
    %30 = vector.load %arg6[%c0_15, %c0_16, %c0_17] : memref<2x5x32xf32, #tpu.memory_space<vmem>>, vector<1x5x32xf32>
    %31 = vector.shape_cast %30 : vector<1x5x32xf32> to vector<5x32xf32>
    %32 = vector.shape_cast %29 : vector<5x32xf32> to vector<1x5x32xf32>
    tpu.vector_store %arg6[%c0_15, %c0_16, %c0_17], %32 {strides = array<i32>} : memref<2x5x32xf32, #tpu.memory_space<vmem>>, vector<1x5x32xf32>,
    %c1 = arith.constant 1 : index
    %c0_18 = arith.constant 0 : index
    %c0_19 = arith.constant 0 : index
    %33 = vector.load %arg1[%c1, %c0_18, %c0_19] : memref<2x5x256xbf16, #tpu.memory_space<vmem>>, vector<1x5x256xbf16>
    %34 = vector.shape_cast %33 : vector<1x5x256xbf16> to vector<5x256xbf16>
    %cst_20 = arith.constant dense<0.000000e+00> : vector<5x32xf32>
    %35 = tpu.matmul %34, %0, %cst_20 {dimension_numbers = #tpu.dot_dimension_numbers<[1], [0], [0], [1], [0, 0, 1, 1], [], []>} : vector<5x256xbf16>, vector<256x32xbf16>, vector<5x32xf32> -> vector<5x32xf32>
    %36 = arith.addf %35, %1 : vector<5x32xf32>
    %cst_21 = arith.constant dense<0.000000e+00> : vector<5xf32>
    %37 = vector.multi_reduction <add>, %36, %cst_21 [1] : vector<5x32xf32> to vector<5xf32>
    %38 = vector.shape_cast %37 : vector<5xf32> to vector<5x1xf32>
    %cst_22 = arith.constant 3.200000e+01 : f32
    %39 = vector.broadcast %cst_22 : f32 to vector<5x1xf32>
    %40 = arith.divf %38, %39 : vector<5x1xf32>
    %41 = vector.broadcast %40 : vector<5x1xf32> to vector<5x32xf32>
    %42 = arith.subf %36, %41 : vector<5x32xf32>
    %43 = arith.mulf %42, %42 : vector<5x32xf32>
    %cst_23 = arith.constant dense<0.000000e+00> : vector<5xf32>
    %44 = vector.multi_reduction <add>, %43, %cst_23 [1] : vector<5x32xf32> to vector<5xf32>
    %45 = vector.shape_cast %44 : vector<5xf32> to vector<5x1xf32>
    %cst_24 = arith.constant 3.200000e+01 : f32
    %46 = vector.broadcast %cst_24 : f32 to vector<5x1xf32>
    %47 = arith.divf %45, %46 : vector<5x1xf32>
    %cst_25 = arith.constant 9.99999974E-6 : f32
    %48 = vector.broadcast %cst_25 : f32 to vector<5x1xf32>
    %49 = arith.addf %47, %48 : vector<5x1xf32>
    %50 = math.rsqrt %49 : vector<5x1xf32>
    %51 = vector.broadcast %50 : vector<5x1xf32> to vector<5x32xf32>
    %52 = arith.mulf %42, %51 : vector<5x32xf32>
    %53 = arith.mulf %52, %4 : vector<5x32xf32>
    %54 = arith.addf %53, %7 : vector<5x32xf32>
    %c1_26 = arith.constant 1 : index
    %c0_27 = arith.constant 0 : index
    %c0_28 = arith.constant 0 : index
    %55 = vector.load %arg6[%c1_26, %c0_27, %c0_28] : memref<2x5x32xf32, #tpu.memory_space<vmem>>, vector<1x5x32xf32>
    %56 = vector.shape_cast %55 : vector<1x5x32xf32> to vector<5x32xf32>
    %57 = vector.shape_cast %54 : vector<5x32xf32> to vector<1x5x32xf32>
    tpu.vector_store %arg6[%c1_26, %c0_27, %c0_28], %57 {strides = array<i32>} : memref<2x5x32xf32, #tpu.memory_space<vmem>>, vector<1x5x32xf32>,
    return
  }
  func.func @transform_0(%arg0: i32) -> (i32, i32, i32) {
    %c0_i32 = arith.constant 0 : i32
    %c0_i32_0 = arith.constant 0 : i32
    %c0_i32_1 = arith.constant 0 : i32
    return %arg0, %c0_i32, %c0_i32_0 : i32, i32, i32
  }
  func.func @transform_1(%arg0: i32) -> (i32, i32) {
    %c0_i32 = arith.constant 0 : i32
    %c0_i32_0 = arith.constant 0 : i32
    %c0_i32_1 = arith.constant 0 : i32
    return %c0_i32, %c0_i32_0 : i32, i32
  }
  func.func @transform_2(%arg0: i32) -> (i32, i32) {
    %c0_i32 = arith.constant 0 : i32
    %c0_i32_0 = arith.constant 0 : i32
    %c0_i32_1 = arith.constant 0 : i32
    return %c0_i32, %c0_i32_0 : i32, i32
  }
  func.func @transform_3(%arg0: i32) -> (i32, i32) {
    %c0_i32 = arith.constant 0 : i32
    %c0_i32_0 = arith.constant 0 : i32
    %c0_i32_1 = arith.constant 0 : i32
    return %c0_i32, %c0_i32_0 : i32, i32
  }
  func.func @transform_4(%arg0: i32) -> (i32, i32) {
    %c0_i32 = arith.constant 0 : i32
    %c0_i32_0 = arith.constant 0 : i32
    %c0_i32_1 = arith.constant 0 : i32
    return %c0_i32, %c0_i32_0 : i32, i32
  }
  func.func @transform_5(%arg0: i32) -> (i32, i32, i32) {
    %c0_i32 = arith.constant 0 : i32
    %c0_i32_0 = arith.constant 0 : i32
    %c0_i32_1 = arith.constant 0 : i32
    return %arg0, %c0_i32, %c0_i32_0 : i32, i32, i32
  }
}

</mosaic_0001>

<llo_original>
// kernel: clip_input_embedding.1
$region0: #{clip_input_embedding.1}
  #allocation0 [shape = 'u32[]', space=smem, size = 0x4, offset = 0x4, fixed_abs, tag = 'smem constant byte address 0x4 - core index']
  #allocation1 [shape = 'u32[72,128]{1,0:T(1,128)}', space=vmem, size = 0x9000, scoped, tag = 'internal scratch']
  %s0 = inlined_call_operand.vmem [shape: bf16[4,5,256], index: 0, kind: input, shape index: {}]
  %s1 = inlined_call_operand.vmem [shape: bf16[256,32], index: 1, kind: input, shape index: {}]
  %s2 = inlined_call_operand.vmem [shape: f32[5,32], index: 2, kind: input, shape index: {}]
  %s3 = inlined_call_operand.vmem [shape: f32[1,32], index: 3, kind: input, shape index: {}]
  %s4 = inlined_call_operand.vmem [shape: f32[1,32], index: 4, kind: input, shape index: {}]
  %s5 = inlined_call_operand.vmem [shape: f32[4,5,32], index: 5, kind: output, shape index: {}]
  %s6 = sld [smem:[#allocation0]]
  $region53: #{clip_input_embedding.1} parent=0
    _
  %s8 = ssub.s32 1, %s6
  %s9 = scalar_select 0, %s8, %s6
  loop: start=0, step=1, limit=4
  $region2: #{clip_input_embedding.1} parent=0 // loop_pre_header
    _
  $region3: #{clip_input_embedding.1} parent=0 // loop_header
    %s11 = sphi 0, %s15
    %p12 = scmp.ge.s32.totalorder %s11, 4
    %s21 = sphi 0, %s23
    %s24 = sphi 0, %s21
    %s25 = sphi 0, %s24
    %s41 = sphi 0, %s25
    %s45 = sphi 0, %s45
    %s47 = sphi 0, %s45
    %s48 = sphi 0, %s47
    %s62 = sphi 0, %s48
    %s66 = sphi 0, %s66
    %s68 = sphi 0, %s66
    %s69 = sphi 0, %s68
    %s83 = sphi 0, %s69
    %s87 = sphi 0, %s87
    %s89 = sphi 0, %s87
    %s90 = sphi 0, %s89
    %s104 = sphi 0, %s90
    %s108 = sphi 0, %s108
    %s110 = sphi 0, %s108
    %s111 = sphi 0, %s110
    %s125 = sphi 0, %s111
    %s131 = sphi 0, %s133
    %s134 = sphi 0, %s131
    %s135 = sphi 0, %s134
    %s151 = sphi 0, %s135
  $region4: #{clip_input_embedding.1} parent=0 // loop_header_branch
    %14 = sbr.rel (%p12) target = $region8
  $region5: #{clip_input_embedding.1} parent=0 // loop_body
    %s16 = ssub.s32 %s11, 1
    %s17 = ssub.s32 %s11, 2
    %s18 = sadd.s32 %s11, 1
    %s19 = ssub.s32 %s11, %s18
    %p20 = scmp.eq.s32.totalorder %s19, 0
    %s22 = sadd.s32 %s21, 1
    %s23 = scalar_select %p20, %s21, %s22
    %p26 = pneg %p20
    %p27 = scmp.eq.s32.totalorder %s11, 1
    %p28 = por %p26, %p27
    %p29 = scmp.ne.s32.totalorder %s21, %s24
    %p30 = scmp.eq.s32.totalorder %s11, 0
    %p31 = por %p29, %p30
    %p32 = scmp.ne.s32.totalorder %s21, %s24
    %p33 = scmp.eq.s32.totalorder %s16, 1
    %p34 = por %p32, %p33
    %p35 = scmp.ne.s32.totalorder %s24, %s25
    %p36 = scmp.eq.s32.totalorder %s16, 0
    %p37 = por %p35, %p36
    %p38 = scmp.ne.s32.totalorder %s24, %s25
    %p39 = scmp.eq.s32.totalorder %s17, 1
    %p40 = por %p38, %p39
    %p42 = scmp.ne.s32.totalorder %s25, %s41
    %p43 = scmp.eq.s32.totalorder %s17, 0
    %p44 = por %p42, %p43
    %s46 = sadd.s32 %s45, 1
    %p49 = scmp.eq.s32.totalorder %s11, 1
    %p50 = scmp.ne.s32.totalorder %s45, %s47
    %p51 = scmp.eq.s32.totalorder %s11, 0
    %p52 = por %p50, %p51
    %p53 = scmp.ne.s32.totalorder %s45, %s47
    %p54 = scmp.eq.s32.totalorder %s16, 1
    %p55 = por %p53, %p54
    %p56 = scmp.ne.s32.totalorder %s47, %s48
    %p57 = scmp.eq.s32.totalorder %s16, 0
    %p58 = por %p56, %p57
    %p59 = scmp.ne.s32.totalorder %s47, %s48
    %p60 = scmp.eq.s32.totalorder %s17, 1
    %p61 = por %p59, %p60
    %p63 = scmp.ne.s32.totalorder %s48, %s62
    %p64 = scmp.eq.s32.totalorder %s17, 0
    %p65 = por %p63, %p64
    %s67 = sadd.s32 %s66, 1
    %p70 = scmp.eq.s32.totalorder %s11, 1
    %p71 = scmp.ne.s32.totalorder %s66, %s68
    %p72 = scmp.eq.s32.totalorder %s11, 0
    %p73 = por %p71, %p72
    %p74 = scmp.ne.s32.totalorder %s66, %s68
    %p75 = scmp.eq.s32.totalorder %s16, 1
    %p76 = por %p74, %p75
    %p77 = scmp.ne.s32.totalorder %s68, %s69
    %p78 = scmp.eq.s32.totalorder %s16, 0
    %p79 = por %p77, %p78
    %p80 = scmp.ne.s32.totalorder %s68, %s69
    %p81 = scmp.eq.s32.totalorder %s17, 1
    %p82 = por %p80, %p81
    %p84 = scmp.ne.s32.totalorder %s69, %s83
    %p85 = scmp.eq.s32.totalorder %s17, 0
    %p86 = por %p84, %p85
    %s88 = sadd.s32 %s87, 1
    %p91 = scmp.eq.s32.totalorder %s11, 1
    %p92 = scmp.ne.s32.totalorder %s87, %s89
    %p93 = scmp.eq.s32.totalorder %s11, 0
    %p94 = por %p92, %p93
    %p95 = scmp.ne.s32.totalorder %s87, %s89
    %p96 = scmp.eq.s32.totalorder %s16, 1
    %p97 = por %p95, %p96
    %p98 = scmp.ne.s32.totalorder %s89, %s90
    %p99 = scmp.eq.s32.totalorder %s16, 0
    %p100 = por %p98, %p99
    %p101 = scmp.ne.s32.totalorder %s89, %s90
    %p102 = scmp.eq.s32.totalorder %s17, 1
    %p103 = por %p101, %p102
    %p105 = scmp.ne.s32.totalorder %s90, %s104
    %p106 = scmp.eq.s32.totalorder %s17, 0
    %p107 = por %p105, %p106
    %s109 = sadd.s32 %s108, 1
    %p112 = scmp.eq.s32.totalorder %s11, 1
    %p113 = scmp.ne.s32.totalorder %s108, %s110
    %p114 = scmp.eq.s32.totalorder %s11, 0
    %p115 = por %p113, %p114
    %p116 = scmp.ne.s32.totalorder %s108, %s110
    %p117 = scmp.eq.s32.totalorder %s16, 1
    %p118 = por %p116, %p117
    %p119 = scmp.ne.s32.totalorder %s110, %s111
    %p120 = scmp.eq.s32.totalorder %s16, 0
    %p121 = por %p119, %p120
    %p122 = scmp.ne.s32.totalorder %s110, %s111
    %p123 = scmp.eq.s32.totalorder %s17, 1
    %p124 = por %p122, %p123
    %p126 = scmp.ne.s32.totalorder %s111, %s125
    %p127 = scmp.eq.s32.totalorder %s17, 0
    %p128 = por %p126, %p127
    %s129 = ssub.s32 %s11, %s18
    %p130 = scmp.eq.s32.totalorder %s129, 0
    %s132 = sadd.s32 %s131, 1
    %s133 = scalar_select %p130, %s131, %s132
    %p136 = pneg %p130
    %p137 = scmp.eq.s32.totalorder %s11, 1
    %p138 = por %p136, %p137
    %p139 = scmp.ne.s32.totalorder %s131, %s134
    %p140 = scmp.eq.s32.totalorder %s11, 0
    %p141 = por %p139, %p140
    %p142 = scmp.ne.s32.totalorder %s131, %s134
    %p143 = scmp.eq.s32.totalorder %s16, 1
    %p144 = por %p142, %p143
    %p145 = scmp.ne.s32.totalorder %s134, %s135
    %p146 = scmp.eq.s32.totalorder %s16, 0
    %p147 = por %p145, %p146
    %p148 = scmp.ne.s32.totalorder %s134, %s135
    %p149 = scmp.eq.s32.totalorder %s17, 1
    %p150 = por %p148, %p149
    %p152 = scmp.ne.s32.totalorder %s135, %s151
    %p153 = scmp.eq.s32.totalorder %s17, 0
    %p154 = por %p152, %p153
    %p155 = scmp.le.s32.totalorder 1, %s11
    %p156 = scmp.lt.s32.totalorder %s11, 3
    %p157 = pnand %p155, %p156
    %p158 = pneg %p157
    // Predicated region
    $region9: #{clip_input_embedding.1} parent=5 // pred_check
      _
    $region10: #{clip_input_embedding.1} parent=5 // pred_check_branch
      %160 = sbr.rel (%p157) target = $region12
    $region11: #{clip_input_embedding.1} parent=5 // pred_region
      %s161 = ssub.s32 %s11, 1
      // Predicated region
      $region13: #{clip_input_embedding.1} parent=11 // pred_check
        %p162 = pneg %p58
      $region14: #{clip_input_embedding.1} parent=11 // pred_check_branch
        %164 = sbr.rel (%p162) target = $region16
      $region15: #{clip_input_embedding.1} parent=11 // pred_region
        _
      $region16: #{clip_input_embedding.1} parent=11 // pred_fallthru
        _
      // Predicated region
      $region17: #{clip_input_embedding.1} parent=11 // pred_check
        %p165 = pneg %p79
      $region18: #{clip_input_embedding.1} parent=11 // pred_check_branch
        %167 = sbr.rel (%p165) target = $region20
      $region19: #{clip_input_embedding.1} parent=11 // pred_region
        _
      $region20: #{clip_input_embedding.1} parent=11 // pred_fallthru
        _
      // Predicated region
      $region21: #{clip_input_embedding.1} parent=11 // pred_check
        %p168 = pneg %p100
      $region22: #{clip_input_embedding.1} parent=11 // pred_check_branch
        %170 = sbr.rel (%p168) target = $region24
      $region23: #{clip_input_embedding.1} parent=11 // pred_region
        _
      $region24: #{clip_input_embedding.1} parent=11 // pred_fallthru
        _
      // Predicated region
      $region25: #{clip_input_embedding.1} parent=11 // pred_check
        %p171 = pneg %p121
      $region26: #{clip_input_embedding.1} parent=11 // pred_check_branch
        %173 = sbr.rel (%p171) target = $region28
      $region27: #{clip_input_embedding.1} parent=11 // pred_region
        _
      $region28: #{clip_input_embedding.1} parent=11 // pred_fallthru
        _
    $region12: #{clip_input_embedding.1} parent=5 // pred_fallthru
      _
    %p174 = scmp.lt.s32.totalorder %s11, 2
    // Predicated region
    $region29: #{clip_input_embedding.1} parent=5 // pred_check
      %p175 = pneg %p174
    $region30: #{clip_input_embedding.1} parent=5 // pred_check_branch
      %177 = sbr.rel (%p175) target = $region32
    $region31: #{clip_input_embedding.1} parent=5 // pred_region
      // Predicated region
      $region33: #{clip_input_embedding.1} parent=31 // pred_check
        %p178 = pneg %p31
      $region34: #{clip_input_embedding.1} parent=31 // pred_check_branch
        %180 = sbr.rel (%p178) target = $region36
      $region35: #{clip_input_embedding.1} parent=31 // pred_region
        %s181 = smul.u32 2, %s11
        %p182 = scmp.lt.s32.totalorder %s181, 3
        %s183 = scalar_select %p182, %s181, 3
        %s184 = smul.addr %s183, 2
        %s185 = smul.addr %s184, 4
        %s186 = scalar_lea.vmem %s0, %s185
        %s187 = smul.u32 2, %s11
      $region36: #{clip_input_embedding.1} parent=31 // pred_fallthru
        _
    $region32: #{clip_input_embedding.1} parent=5 // pred_fallthru
      _
    %p188 = scmp.le.s32.totalorder 1, %s11
    %p189 = scmp.lt.s32.totalorder %s11, 3
    %p190 = pnand %p188, %p189
    %p191 = pneg %p190
    // Predicated region
    $region37: #{clip_input_embedding.1} parent=5 // pred_check
      _
    $region38: #{clip_input_embedding.1} parent=5 // pred_check_branch
      %193 = sbr.rel (%p190) target = $region40
    $region39: #{clip_input_embedding.1} parent=5 // pred_region
      %s194 = ssub.s32 %s11, 1
      %s195 = smul.u32 2, %s16
      %p196 = scmp.lt.s32.totalorder %s195, 3
      %s197 = scalar_select %p196, %s195, 3
      %s198 = smul.addr %s197, 2
      %s199 = smul.addr %s198, 4
      %s200 = scalar_lea.vmem %s0, %s199
      %p201 = pneg %p37
      %p202 = pneg %p34
      %p203 = pneg %p58
      %p204 = pneg %p55
      %p205 = pneg %p79
      %p206 = pneg %p76
      %p207 = pneg %p100
      %p208 = pneg %p97
      %p209 = pneg %p121
      %p210 = pneg %p118
      %p211 = pneg %p147
      %p212 = pneg %p144
      %s213 = smul.u32 2, %s16
      %p214 = scmp.lt.s32.totalorder %s213, 3
      %s215 = scalar_select %p214, %s213, 3
      %s216 = smul.addr %s215, 8
      %s217 = scalar_lea.vmem %s5, %s216
      %s218 = smul.u32 2, %s16
      %p219 = scmp.lt.s32.totalorder %s218, 3
      %s220 = scalar_select %p219, %s218, 3
      %s221 = smul.addr %s220, 2
      %s222 = smul.addr %s221, 4
      %s223 = scalar_lea.vmem %s0, %s222
      %s224 = smul.u32 2, %s16
      %s225 = smul.u32 2, %s16
      %p226 = scmp.lt.s32.totalorder %s225, 3
      %s227 = scalar_select %p226, %s225, 3
      %s228 = smul.addr %s227, 8
      %s229 = scalar_lea.vmem %s5, %s228
      %s230 = smul.u32 2, %s16
      %v231 = vld [vmem:[%s1] sm:$0xf]
      %v232 = vld [vmem:[%s1 + $0x4] sm:$0xf]
      %v233 = vld [vmem:[%s1 + $0x8] sm:$0xf]
      %v234 = vld [vmem:[%s1 + $0xc] sm:$0xf]
      %v235 = vld [vmem:[%s1 + $0x10] sm:$0xf]
      %v236 = vld [vmem:[%s1 + $0x14] sm:$0xf]
      %v237 = vld [vmem:[%s1 + $0x18] sm:$0xf]
      %v238 = vld [vmem:[%s1 + $0x1c] sm:$0xf]
      %v239 = vld [vmem:[%s1 + $0x20] sm:$0xf]
      %v240 = vld [vmem:[%s1 + $0x24] sm:$0xf]
      %v241 = vld [vmem:[%s1 + $0x28] sm:$0xf]
      %v242 = vld [vmem:[%s1 + $0x2c] sm:$0xf]
      %v243 = vld [vmem:[%s1 + $0x30] sm:$0xf]
      %v244 = vld [vmem:[%s1 + $0x34] sm:$0xf]
      %v245 = vld [vmem:[%s1 + $0x38] sm:$0xf]
      %v246 = vld [vmem:[%s1 + $0x3c] sm:$0xf]
      %v247 = vld [vmem:[%s1 + $0x40] sm:$0xf]
      %v248 = vld [vmem:[%s1 + $0x44] sm:$0xf]
      %v249 = vld [vmem:[%s1 + $0x48] sm:$0xf]
      %v250 = vld [vmem:[%s1 + $0x4c] sm:$0xf]
      %v251 = vld [vmem:[%s1 + $0x50] sm:$0xf]
      %v252 = vld [vmem:[%s1 + $0x54] sm:$0xf]
      %v253 = vld [vmem:[%s1 + $0x58] sm:$0xf]
      %v254 = vld [vmem:[%s1 + $0x5c] sm:$0xf]
      %v255 = vld [vmem:[%s1 + $0x60] sm:$0xf]
      %v256 = vld [vmem:[%s1 + $0x64] sm:$0xf]
      %v257 = vld [vmem:[%s1 + $0x68] sm:$0xf]
      %v258 = vld [vmem:[%s1 + $0x6c] sm:$0xf]
      %v259 = vld [vmem:[%s1 + $0x70] sm:$0xf]
      %v260 = vld [vmem:[%s1 + $0x74] sm:$0xf]
      %v261 = vld [vmem:[%s1 + $0x78] sm:$0xf]
      %v262 = vld [vmem:[%s1 + $0x7c] sm:$0xf]
      %v263 = vld [vmem:[%s2] sm:$0x1f]
      %v264 = vld [vmem:[%s3] sm:$0x1]
      %v266 = vperm.slane %v264, 0
      %v268 = vld [vmem:[%s4] sm:$0x1]
      %v270 = vperm.slane %v268, 0
      %v272 = vld [vmem:[%s223] sm:$0x77]
      %v274 = vunpack.c.l.b16 %v272
      %v275 = vunpack.c.h.b16 %v272
      %v276 = vpack.c.b16 %v274, %v274
      %v277 = vpack.c.b16 %v275, %v275
      %v312 = vunpack.c.l.b16 %v231
      %v313 = vunpack.c.l.b16 %v232
      %v314 = vunpack.c.l.b16 %v233
      %v315 = vunpack.c.l.b16 %v234
      %v316 = vunpack.c.l.b16 %v235
      %v317 = vunpack.c.l.b16 %v236
      %v318 = vunpack.c.l.b16 %v237
      %v319 = vunpack.c.l.b16 %v238
      %v320 = vunpack.c.l.b16 %v239
      %v321 = vunpack.c.l.b16 %v240
      %v322 = vunpack.c.l.b16 %v241
      %v323 = vunpack.c.l.b16 %v242
      %v324 = vunpack.c.l.b16 %v243
      %v325 = vunpack.c.l.b16 %v244
      %v326 = vunpack.c.l.b16 %v245
      %v327 = vunpack.c.l.b16 %v246
      %v328 = vunpack.c.l.b16 %v247
      %v329 = vunpack.c.l.b16 %v248
      %v330 = vunpack.c.l.b16 %v249
      %v331 = vunpack.c.l.b16 %v250
      %v332 = vunpack.c.l.b16 %v251
      %v333 = vunpack.c.l.b16 %v252
      %v334 = vunpack.c.l.b16 %v253
      %v335 = vunpack.c.l.b16 %v254
      %v336 = vunpack.c.l.b16 %v255
      %v337 = vunpack.c.l.b16 %v256
      %v338 = vunpack.c.l.b16 %v257
      %v339 = vunpack.c.l.b16 %v258
      %v340 = vunpack.c.l.b16 %v259
      %v341 = vunpack.c.l.b16 %v260
      %v342 = vunpack.c.l.b16 %v261
      %v343 = vunpack.c.l.b16 %v262
      %v344 = vpack.c.b16 %v313, %v312
      %v345 = vpack.c.b16 %v315, %v314
      %v346 = vpack.c.b16 %v317, %v316
      %v347 = vpack.c.b16 %v319, %v318
      %v348 = vpack.c.b16 %v321, %v320
      %v349 = vpack.c.b16 %v323, %v322
      %v350 = vpack.c.b16 %v325, %v324
      %v351 = vpack.c.b16 %v327, %v326
      %v352 = vpack.c.b16 %v329, %v328
      %v353 = vpack.c.b16 %v331, %v330
      %v354 = vpack.c.b16 %v333, %v332
      %v355 = vpack.c.b16 %v335, %v334
      %v356 = vpack.c.b16 %v337, %v336
      %v357 = vpack.c.b16 %v339, %v338
      %v358 = vpack.c.b16 %v341, %v340
      %v359 = vpack.c.b16 %v343, %v342
      %376 = vmatpush.bf16.msra.mxu0 %v351
      %377 = vmatpush.bf16.msra.mxu0 %v350
      %378 = vmatpush.bf16.msra.mxu0 %v349
      %379 = vmatpush.bf16.msra.mxu0 %v348
      %380 = vmatpush.bf16.msra.mxu0 %v347
      %381 = vmatpush.bf16.msra.mxu0 %v346
      %382 = vmatpush.bf16.msra.mxu0 %v345
      %383 = vmatpush.bf16.msra.mxu0 %v344
      %384 = vmatmul.bf16.gmra.mxu0 %v276
      %v385 = vpop.f32.mrf.mxu0
      %v386 = vadd.f32 %v263, %v385
      %v387 = vpop.f32.mrf.mxu0
      %388 = vdwg.mxu0
      %389 = vmatpush.bf16.msra.mxu0 %v359
      %390 = vmatpush.bf16.msra.mxu0 %v358
      %391 = vmatpush.bf16.msra.mxu0 %v357
      %392 = vmatpush.bf16.msra.mxu0 %v356
      %393 = vmatpush.bf16.msra.mxu0 %v355
      %394 = vmatpush.bf16.msra.mxu0 %v354
      %395 = vmatpush.bf16.msra.mxu0 %v353
      %396 = vmatpush.bf16.msra.mxu0 %v352
      %397 = vmatmul.bf16.gmra.mxu0 %v277
      %v398 = vpop.f32.mrf.mxu0
      %v399 = vadd.f32 %v386, %v398
      %v400 = vpop.f32.mrf.mxu0
      %401 = vdwg.mxu0
      %vm402 = vcmask 258048
      %v403 = vsel %vm402, %v399, 0.0
      %404 = vadd.xlane.f32.xlu0 %v403
      %v405 = vpop.xlane.xlu0 %404
      %v406 = vrcp.pop 32.0
      %v407 = vmul.f32 32.0, %v406
      %v408 = vsub.f32 1.0, %v407
      %v409 = vmul.f32 %v406, %v408
      %v410 = vadd.f32 %v406, %v409
      %vm411 = vweird.f32 %v406
      %v412 = vsel %vm411, %v406, %v410
      %v413 = vmul.f32 %v405, %v412
      %v414 = vsub.f32 %v399, %v413
      %v415 = vmul.f32 %v414, %v414
      %v416 = vsel %vm402, %v415, 0.0
      %417 = vadd.xlane.f32.xlu0 %v416
      %v418 = vpop.xlane.xlu0 %417
      %v419 = vmul.f32 %v418, %v412
      %v420 = vadd.f32 %v419, 1e-05
      %v421 = vrsqrt.pop %v420
      %v422 = vmul.f32 %v421, %v420
      %v423 = vmul.f32 %v422, %v421
      %v424 = vmul.f32 0.5, %v423
      %v425 = vsub.f32 1.5, %v424
      %v426 = vmul.f32 %v421, %v425
      %vm427 = vweird.f32 %v420
      %vm428 = vweird.f32 %v421
      %vm429 = vmor %vm427, %vm428
      %v430 = vsel %vm429, %v421, %v426
      %v431 = vmul.f32 %v414, %v430
      %v432 = vmul.f32 %v431, %v266
      %v433 = vadd.f32 %v432, %v270
      %434 = vst.msk [vmem:[%s229] sm:$0x1f] %vm402, %v433
      %s435 = scalar_lea.vmem %s223, 8
      %v436 = vld [vmem:[%s435] sm:$0x77]
      %v438 = vunpack.c.l.b16 %v436
      %v439 = vunpack.c.h.b16 %v436
      %v440 = vpack.c.b16 %v438, %v438
      %v441 = vpack.c.b16 %v439, %v439
      %444 = vmatpush.bf16.msra.mxu0 %v351
      %445 = vmatpush.bf16.msra.mxu0 %v350
      %446 = vmatpush.bf16.msra.mxu0 %v349
      %447 = vmatpush.bf16.msra.mxu0 %v348
      %448 = vmatpush.bf16.msra.mxu0 %v347
      %449 = vmatpush.bf16.msra.mxu0 %v346
      %450 = vmatpush.bf16.msra.mxu0 %v345
      %451 = vmatpush.bf16.msra.mxu0 %v344
      %452 = vmatmul.bf16.gmra.mxu0 %v440
      %v453 = vpop.f32.mrf.mxu0
      %v454 = vadd.f32 %v263, %v453
      %v455 = vpop.f32.mrf.mxu0
      %456 = vdwg.mxu0
      %457 = vmatpush.bf16.msra.mxu0 %v359
      %458 = vmatpush.bf16.msra.mxu0 %v358
      %459 = vmatpush.bf16.msra.mxu0 %v357
      %460 = vmatpush.bf16.msra.mxu0 %v356
      %461 = vmatpush.bf16.msra.mxu0 %v355
      %462 = vmatpush.bf16.msra.mxu0 %v354
      %463 = vmatpush.bf16.msra.mxu0 %v353
      %464 = vmatpush.bf16.msra.mxu0 %v352
      %465 = vmatmul.bf16.gmra.mxu0 %v441
      %v466 = vpop.f32.mrf.mxu0
      %v467 = vadd.f32 %v454, %v466
      %v468 = vpop.f32.mrf.mxu0
      %469 = vdwg.mxu0
      %v470 = vsel %vm402, %v467, 0.0
      %471 = vadd.xlane.f32.xlu0 %v470
      %v472 = vpop.xlane.xlu0 %471
      %v473 = vmul.f32 %v472, %v412
      %v474 = vsub.f32 %v467, %v473
      %v475 = vmul.f32 %v474, %v474
      %v476 = vsel %vm402, %v475, 0.0
      %477 = vadd.xlane.f32.xlu0 %v476
      %v478 = vpop.xlane.xlu0 %477
      %v479 = vmul.f32 %v478, %v412
      %v480 = vadd.f32 %v479, 1e-05
      %v481 = vrsqrt.pop %v480
      %v482 = vmul.f32 %v481, %v480
      %v483 = vmul.f32 %v482, %v481
      %v484 = vmul.f32 0.5, %v483
      %v485 = vsub.f32 1.5, %v484
      %v486 = vmul.f32 %v481, %v485
      %vm487 = vweird.f32 %v480
      %vm488 = vweird.f32 %v481
      %vm489 = vmor %vm487, %vm488
      %v490 = vsel %vm489, %v481, %v486
      %v491 = vmul.f32 %v474, %v490
      %v492 = vmul.f32 %v491, %v266
      %v493 = vadd.f32 %v492, %v270
      %s494 = scalar_lea.vmem %s229, 8
      %495 = vst.msk [vmem:[%s494] sm:$0x1f] %vm402, %v493
      %s496 = smul.u32 2, %s16
      %p497 = scmp.lt.s32.totalorder %s496, 3
      %s498 = scalar_select %p497, %s496, 3
      %s499 = smul.addr %s498, 8
      %s500 = scalar_lea.vmem %s5, %s499
      // Predicated region
      $region41: #{clip_input_embedding.1} parent=39 // pred_check
        %p501 = pneg %p144
      $region42: #{clip_input_embedding.1} parent=39 // pred_check_branch
        %503 = sbr.rel (%p501) target = $region44
      $region43: #{clip_input_embedding.1} parent=39 // pred_region
        %s504 = smul.u32 2, %s16
      $region44: #{clip_input_embedding.1} parent=39 // pred_fallthru
        _
    $region40: #{clip_input_embedding.1} parent=5 // pred_fallthru
      _
    %p505 = scmp.le.s32.totalorder 2, %s11
    // Predicated region
    $region45: #{clip_input_embedding.1} parent=5 // pred_check
      %p506 = pneg %p505
    $region46: #{clip_input_embedding.1} parent=5 // pred_check_branch
      %508 = sbr.rel (%p506) target = $region48
    $region47: #{clip_input_embedding.1} parent=5 // pred_region
      %s509 = ssub.s32 %s11, 2
      // Predicated region
      $region49: #{clip_input_embedding.1} parent=47 // pred_check
        %p510 = pneg %p150
      $region50: #{clip_input_embedding.1} parent=47 // pred_check_branch
        %512 = sbr.rel (%p510) target = $region52
      $region51: #{clip_input_embedding.1} parent=47 // pred_region
        %s513 = smul.u32 2, %s17
        %p514 = scmp.lt.s32.totalorder %s513, 3
        %s515 = scalar_select %p514, %s513, 3
        %s516 = smul.addr %s515, 8
        %s517 = scalar_lea.vmem %s5, %s516
      $region52: #{clip_input_embedding.1} parent=47 // pred_fallthru
        _
    $region48: #{clip_input_embedding.1} parent=5 // pred_fallthru
      _
  $region6: #{clip_input_embedding.1} parent=0 // loop_footer
    %s15 = sadd.s32 1, %s11
  $region7: #{clip_input_embedding.1} parent=0 // loop_footer_branch
    %10 = sbr.rel target = $region3
  $region8: #{clip_input_embedding.1} parent=0 // loop_exit
    _

</llo_original>
